<compile_context>
chip_gen: v7x
topology: tpu7x:2x2x1
jax: 0.10.0
libtpu: 0.0.40
codegen_flags: <defaults>
</compile_context>

<pallas_src>
import functools

import jax
import jax.numpy as jnp
from jax.experimental import pallas as pl
from jax.experimental.pallas import tpu as pltpu


def _round_up(a, b):
    return (a + b - 1) // b * b


def _vmem_bytes(tm, tn, D):
    # double-buffered f32 tiles: X (tm,D), Y^T (D,tn), x2 (tm,1), y2 (1,tn), out (tm,tn)
    return 2 * 4 * (tm * D + D * tn + tm + tn + tm * tn)


_VMEM_BUDGET = 40 * 1024 * 1024          # fits under v7x 64 MiB physical VMEM
_VMEM_LIMIT_CAP = 48 * 1024 * 1024       # scoped-VMEM limit safe on v5e/v6e/v7x


def _rbf_fused_kernel(nis_ref, x_ref, yt_ref, x2_ref, y2_ref, o_ref,
                      *, n_kernels, use_squaring):
    """out_tile = sum_k exp(-||x - y||^2 / sf[k]) for one (tm, tn) tile.

    nis_ref : (K,) SMEM scalars, nis[k] = -1 / sf[k]   (unused on squaring path)
    x_ref   : (tm, D)  row tile of X
    yt_ref  : (D, tn)  column tile of (prescaled) Y^T
    x2_ref  : (tm, 1)  (prescaled) ||x||^2
    y2_ref  : (1, tn)  (prescaled) ||y||^2
    """
    xy = jnp.dot(x_ref[...], yt_ref[...],
                 preferred_element_type=jnp.float32)             # (tm, tn) on MXU
    arg = x2_ref[...] + y2_ref[...] + xy                          # scales pre-folded

    if use_squaring:
        # arg == -d / sf[K-1] already (wrapper folded -1/sf_max into x2/y2/Y^T).
        # sf[k-1] = sf[k] / 2  =>  exp(-d/sf[k-1]) = exp(-d/sf[k])**2:
        # one EUP exp, then K-1 VPU squarings (co-issue free).
        arg = jnp.minimum(arg, 0.0)                               # d >= 0
        e = jnp.exp(arg)
        acc = e
        for _ in range(n_kernels - 1):
            e = e * e
            acc = acc + e
    else:
        # arg == ||x||^2 + ||y||^2 - 2 x.y  (only the -2 folded into Y^T).
        d = jnp.maximum(arg, 0.0)
        acc = jnp.exp(d * nis_ref[0])                             # init with term 0
        for k in range(1, n_kernels):                             # K small & static
            acc = acc + jnp.exp(d * nis_ref[k])

    o_ref[...] = acc


def rbf_forward(X, Y=None, *, n_kernels=5, mul_factor=2.0, bw=None):
    """JAX/Pallas equivalent of RBF(device, n_kernels, mul_factor, bw).forward(X, Y)."""
    X = jnp.asarray(X, jnp.float32)
    Yv = X if Y is None else jnp.asarray(Y, jnp.float32)
    N, D = X.shape
    M, _ = Yv.shape

    # ---- bandwidth(s) (matches RBF.get_bw: denominator uses X.shape[0]) ------
    mult = jnp.float32(mul_factor) ** (
        jnp.arange(n_kernels, dtype=jnp.float32) - (n_kernels // 2))
    if bw is None:
        # Exact closed form for sum_ij ||x_i - y_j||^2 (shift-invariant; center
        # at mean(X) to avoid cancellation).  O((N+M)*D) instead of a full pass.
        c = jnp.mean(X, axis=0, keepdims=True)
        Xc = X - c
        Yc = Yv - c
        l2_sum = (M * jnp.sum(Xc * Xc) + N * jnp.sum(Yc * Yc)
                  - 2.0 * jnp.dot(jnp.sum(Xc, axis=0), jnp.sum(Yc, axis=0)))
        bw_val = l2_sum / (N * N - N)  # TODO(synk): N == 1 divides by zero, same as the torch module.
    else:
        bw_val = jnp.asarray(bw, jnp.float32)
    sf = bw_val * mult                                            # (K,)
    neg_inv_sf = (-1.0 / sf).astype(jnp.float32)                  # K SMEM scalars

    # ---- tiling / padding ----------------------------------------------------
    tm = min(512, _round_up(N, 8))            # sublane tile (rows of X / output)
    tn = min(2048, _round_up(M, 128))         # lane tile (cols), multiple of 128
    # Keep double-buffered tiles under the VMEM budget (v7x has 64 MiB physical).
    while _vmem_bytes(tm, tn, D) > _VMEM_BUDGET and tn > 128:
        tn = max(128, _round_up(tn // 2, 128))
    while _vmem_bytes(tm, tn, D) > _VMEM_BUDGET and tm > 8:
        tm = max(8, _round_up(tm // 2, 8))
    Np = _round_up(N, tm)
    Mp = _round_up(M, tn)
    # Megacore (v7x): ensure >=2 grid blocks when the problem size allows,
    # shrinking tn (not tm) so streamed-X traffic stays low.
    if (Np // tm) * (Mp // tn) == 1 and Mp >= 256:
        tn = max(128, _round_up(Mp // 2, 128))
        Mp = _round_up(M, tn)

    Xp = jnp.pad(X, ((0, Np - N), (0, 0)))                        # (Np, D)
    Yt_raw = jnp.pad(Yv.T, ((0, 0), (0, Mp - M)))                 # (D, Mp)
    x2 = jnp.sum(Xp * Xp, axis=1, keepdims=True)                  # (Np, 1)
    y2 = jnp.sum(Yt_raw * Yt_raw, axis=0, keepdims=True)          # (1, Mp)

    use_squaring = float(mul_factor) == 2.0
    if use_squaring:
        # Fold -1/sf_max into the small operands so the kernel does no scaling.
        s = neg_inv_sf[n_kernels - 1]                             # -1/sf_max (< 0)
        Ytp = Yt_raw * (-2.0 * s)
        x2 = x2 * s
        y2 = y2 * s
    else:
        Ytp = Yt_raw * (-2.0)                                     # fold only the -2

    grid = (Np // tm, Mp // tn)
    kernel = functools.partial(_rbf_fused_kernel,
                               n_kernels=n_kernels,
                               use_squaring=use_squaring)

    vmem_limit = min(_VMEM_LIMIT_CAP,
                     max(32 * 1024 * 1024, _vmem_bytes(tm, tn, D) + (4 << 20)))

    out_p = pl.pallas_call(
        kernel,
        out_shape=jax.ShapeDtypeStruct((Np, Mp), jnp.float32),
        grid=grid,
        in_specs=[
            pl.BlockSpec(memory_space=pltpu.MemorySpace.SMEM),    # -1/sf scalars
            pl.BlockSpec((tm, D), lambda i, j: (i, 0)),           # X row tile
            pl.BlockSpec((D, tn), lambda i, j: (0, j)),           # Y^T col tile
            pl.BlockSpec((tm, 1), lambda i, j: (i, 0)),           # ||x||^2 (scaled)
            pl.BlockSpec((1, tn), lambda i, j: (0, j)),           # ||y||^2 (scaled)
        ],
        out_specs=pl.BlockSpec((tm, tn), lambda i, j: (i, j)),
        compiler_params=pltpu.CompilerParams(
            dimension_semantics=("parallel", "parallel"),
            vmem_limit_bytes=vmem_limit),
        cost_estimate=pl.CostEstimate(
            flops=2 * Np * Mp * D + (3 + 2 * n_kernels) * Np * Mp,
            transcendentals=Np * Mp * (1 if use_squaring else n_kernels),
            bytes_accessed=4 * (Np * D + D * Mp + Np + Mp + Np * Mp)),
    )(neg_inv_sf, Xp, Ytp, x2, y2)

    return out_p[:N, :M]


def _rbf_reference(X, Y=None, *, n_kernels=5, mul_factor=2.0, bw=None):
    """Pure-jnp reference mirroring the PyTorch module."""
    X = jnp.asarray(X, jnp.float32)
    Y = X if Y is None else jnp.asarray(Y, jnp.float32)
    d = jnp.sum((X[:, None, :] - Y[None, :, :]) ** 2, axis=-1)
    mult = jnp.asarray(mul_factor, jnp.float32) ** (
        jnp.arange(n_kernels, dtype=jnp.float32) - (n_kernels // 2))
    n = X.shape[0]
    bw_val = (jnp.sum(d) / (n * n - n)) if bw is None else jnp.asarray(bw, jnp.float32)
    sf = (bw_val * mult)[:, None, None]
    return jnp.exp(-d[None, ...] / sf).sum(axis=0)


if __name__ == "__main__":
    key = jax.random.PRNGKey(0)
    kx, ky = jax.random.split(key)

    # X: (N, D) samples-by-features (what torch.cdist expects on the last dim).
    N, D = 128, 32
    X = jax.random.normal(kx, (N, D), dtype=jnp.float32)

    # Default usage: forward(X) with data-driven bandwidth (Y=None, bw=None).
    out = jax.block_until_ready(rbf_forward(X))
    ref = _rbf_reference(X)
    assert out.shape == (N, N)
    assert jnp.allclose(out, ref, rtol=1e-4, atol=1e-4), (
        float(jnp.max(jnp.abs(out - ref))))

    # X-vs-Y path with a fixed bandwidth (M not a multiple of 128 -> padded).
    M = 64
    Y = jax.random.normal(ky, (M, D), dtype=jnp.float32)
    out_xy = jax.block_until_ready(rbf_forward(X, Y, bw=1.5))
    ref_xy = _rbf_reference(X, Y, bw=1.5)
    assert out_xy.shape == (N, M)
    assert jnp.allclose(out_xy, ref_xy, rtol=1e-4, atol=1e-4)

    # Non-default multiplier exercises the general (non-squaring) exp path.
    out_m3 = jax.block_until_ready(rbf_forward(X, Y, mul_factor=3.0, bw=2.0))
    ref_m3 = _rbf_reference(X, Y, mul_factor=3.0, bw=2.0)
    assert jnp.allclose(out_m3, ref_m3, rtol=1e-4, atol=1e-4)

    # Slightly larger case to exercise a multi-block grid (megacore split path).
    N2, M2 = 320, 384
    X2 = jax.random.normal(kx, (N2, D), dtype=jnp.float32)
    Y2 = jax.random.normal(ky, (M2, D), dtype=jnp.float32)
    out_big = jax.block_until_ready(rbf_forward(X2, Y2))
    ref_big = _rbf_reference(X2, Y2)
    assert out_big.shape == (N2, M2)
    assert jnp.allclose(out_big, ref_big, rtol=1e-4, atol=1e-4)

    print("KERNEL_OK")
</pallas_src>

<mosaic_0001>
module attributes {stable_mosaic.version = 11 : i64} {
  func.func @_rbf_fused_kernel(%arg0: i32, %arg1: i32, %arg2: memref<5xf32, #tpu.memory_space<smem>>, %arg3: memref<128x32xf32, #tpu.memory_space<vmem>>, %arg4: memref<32x128xf32, #tpu.memory_space<vmem>>, %arg5: memref<128x1xf32, #tpu.memory_space<vmem>>, %arg6: memref<1x128xf32, #tpu.memory_space<vmem>>, %arg7: memref<128x128xf32, #tpu.memory_space<vmem>>) attributes {dimension_semantics = [#tpu.dimension_semantics<parallel>, #tpu.dimension_semantics<parallel>], iteration_bounds = array<i64: 1, 1>, scalar_prefetch = 0 : i64, scratch_operands = 0 : i64, tpu.core_type = #tpu.core_type<tc>, window_params = [{transform_indices = @transform_0, window_bounds = array<i64: 5>}, {transform_indices = @transform_1, window_bounds = array<i64: 128, 32>}, {transform_indices = @transform_2, window_bounds = array<i64: 32, 128>}, {transform_indices = @transform_3, window_bounds = array<i64: 128, 1>}, {transform_indices = @transform_4, window_bounds = array<i64: 1, 128>}, {transform_indices = @transform_5, window_bounds = array<i64: 128, 128>}]} {
    %c0 = arith.constant 0 : index
    %c0_0 = arith.constant 0 : index
    %0 = vector.load %arg3[%c0, %c0_0] : memref<128x32xf32, #tpu.memory_space<vmem>>, vector<128x32xf32>
    %c0_1 = arith.constant 0 : index
    %c0_2 = arith.constant 0 : index
    %1 = vector.load %arg4[%c0_1, %c0_2] : memref<32x128xf32, #tpu.memory_space<vmem>>, vector<32x128xf32>
    %cst = arith.constant dense<0.000000e+00> : vector<128x128xf32>
    %2 = tpu.matmul %0, %1, %cst {dimension_numbers = #tpu.dot_dimension_numbers<[1], [0], [0], [1], [0, 0, 1, 1], [], []>} : vector<128x32xf32>, vector<32x128xf32>, vector<128x128xf32> -> vector<128x128xf32>
    %c0_3 = arith.constant 0 : index
    %c0_4 = arith.constant 0 : index
    %3 = vector.load %arg5[%c0_3, %c0_4] : memref<128x1xf32, #tpu.memory_space<vmem>>, vector<128x1xf32>
    %c0_5 = arith.constant 0 : index
    %c0_6 = arith.constant 0 : index
    %4 = vector.load %arg6[%c0_5, %c0_6] : memref<1x128xf32, #tpu.memory_space<vmem>>, vector<1x128xf32>
    %5 = vector.broadcast %3 : vector<128x1xf32> to vector<128x128xf32>
    %6 = vector.broadcast %4 : vector<1x128xf32> to vector<128x128xf32>
    %7 = arith.addf %5, %6 : vector<128x128xf32>
    %8 = arith.addf %7, %2 : vector<128x128xf32>
    %cst_7 = arith.constant 0.000000e+00 : f32
    %9 = vector.broadcast %cst_7 : f32 to vector<128x128xf32>
    %10 = arith.minimumf %8, %9 : vector<128x128xf32>
    %11 = math.exp %10 : vector<128x128xf32>
    %12 = arith.mulf %11, %11 : vector<128x128xf32>
    %13 = arith.addf %11, %12 : vector<128x128xf32>
    %14 = arith.mulf %12, %12 : vector<128x128xf32>
    %15 = arith.addf %13, %14 : vector<128x128xf32>
    %16 = arith.mulf %14, %14 : vector<128x128xf32>
    %17 = arith.addf %15, %16 : vector<128x128xf32>
    %18 = arith.mulf %16, %16 : vector<128x128xf32>
    %19 = arith.addf %17, %18 : vector<128x128xf32>
    %c0_8 = arith.constant 0 : index
    %c0_9 = arith.constant 0 : index
    %20 = vector.load %arg7[%c0_8, %c0_9] : memref<128x128xf32, #tpu.memory_space<vmem>>, vector<128x128xf32>
    tpu.vector_store %arg7[%c0_8, %c0_9], %19 {strides = array<i32>} : memref<128x128xf32, #tpu.memory_space<vmem>>, vector<128x128xf32>,
    return
  }
  func.func @transform_0(%arg0: i32, %arg1: i32) -> i32 {
    %c0_i32 = arith.constant 0 : i32
    %c0_i32_0 = arith.constant 0 : i32
    return %c0_i32 : i32
  }
  func.func @transform_1(%arg0: i32, %arg1: i32) -> (i32, i32) {
    %c0_i32 = arith.constant 0 : i32
    %c0_i32_0 = arith.constant 0 : i32
    return %arg0, %c0_i32 : i32, i32
  }
  func.func @transform_2(%arg0: i32, %arg1: i32) -> (i32, i32) {
    %c0_i32 = arith.constant 0 : i32
    %c0_i32_0 = arith.constant 0 : i32
    return %c0_i32, %arg1 : i32, i32
  }
  func.func @transform_3(%arg0: i32, %arg1: i32) -> (i32, i32) {
    %c0_i32 = arith.constant 0 : i32
    %c0_i32_0 = arith.constant 0 : i32
    return %arg0, %c0_i32 : i32, i32
  }
  func.func @transform_4(%arg0: i32, %arg1: i32) -> (i32, i32) {
    %c0_i32 = arith.constant 0 : i32
    %c0_i32_0 = arith.constant 0 : i32
    return %c0_i32, %arg1 : i32, i32
  }
  func.func @transform_5(%arg0: i32, %arg1: i32) -> (i32, i32) {
    %c0_i32 = arith.constant 0 : i32
    return %arg0, %arg1 : i32, i32
  }
}

</mosaic_0001>

<llo_original>
// kernel: tpu_custom_call.1
$region0: #{tpu_custom_call.1}
  #allocation0 [shape = 'u32[]', space=smem, size = 0x4, offset = 0x4, fixed_abs, tag = 'smem constant byte address 0x4 - core index']
  #allocation1 [shape = 'u32[144,128]{1,0:T(1,128)}', space=vmem, size = 0x12000, scoped, tag = 'internal scratch']
  %s0 = inlined_call_operand.vmem [shape: f32[5], index: 0, kind: input, shape index: {}]
  %s1 = inlined_call_operand.vmem [shape: f32[128,32], index: 1, kind: input, shape index: {}]
  %s2 = inlined_call_operand.vmem [shape: f32[32,128], index: 2, kind: input, shape index: {}]
  %s3 = inlined_call_operand.vmem [shape: f32[128,1], index: 3, kind: input, shape index: {}]
  %s4 = inlined_call_operand.vmem [shape: f32[1,128], index: 4, kind: input, shape index: {}]
  %s5 = inlined_call_operand.hbm [shape: f32[128,128], index: 5, kind: output, shape index: {}]
  %s6 = sld [smem:[#allocation0]]
  $region34: #{tpu_custom_call.1} parent=0
    _
  %s8 = ssub.s32 1, %s6
  %s9 = scalar_select 0, %s8, %s6
  $region1: #{tpu_custom_call.1} parent=0
    #allocation2 [shape = 'u8[512]{0}', space=smem, size = 0x200, scoped, tag = 'input window, operand 0, single buffered']
    #allocation3 [shape = 's32[1]{0}', space=sflag, size = 0x4, scoped, tag = 'scoped memory for tpu_custom_call.1']
    #allocation4 [shape = 's32[1]{0}', space=sflag, size = 0x4, scoped, tag = 'scoped memory for tpu_custom_call.1']
    #allocation5 [shape = 'u8[65536]{0}', space=vmem, size = 0x10000, scoped, tag = 'output window, operand 0, single buffered']
    %10 = vsyncpa [#allocation4], 0
    %11 = vsyncpa [#allocation3], 0
    // Predicated region
    $region2: #{tpu_custom_call.1} parent=1 // pred_check
      _
    $region3: #{tpu_custom_call.1} parent=1 // pred_check_branch
      %13 = sbr.rel (0) target = $region5
    $region4: #{tpu_custom_call.1} parent=1 // pred_region
      %s15 = ssub.s32 16, 16
      %16 = vsyncadd [#allocation4], %s15
      %s18 = sshll.u32 %s0, 4
      %s19 = int_to_ptr.vmem [resolvable:$true] %s18
      %21 = dma.vmem_to_smem %s19, 16, [#allocation2], [#allocation4]
    $region5: #{tpu_custom_call.1} parent=1 // pred_fallthru
      _
    // Predicated region
    $region6: #{tpu_custom_call.1} parent=1 // pred_check
      _
    $region7: #{tpu_custom_call.1} parent=1 // pred_check_branch
      %23 = sbr.rel (0) target = $region9
    $region8: #{tpu_custom_call.1} parent=1 // pred_region
      _
    $region9: #{tpu_custom_call.1} parent=1 // pred_fallthru
      _
    // Predicated region
    $region10: #{tpu_custom_call.1} parent=1 // pred_check
      _
    $region11: #{tpu_custom_call.1} parent=1 // pred_check_branch
      %25 = sbr.rel (0) target = $region13
    $region12: #{tpu_custom_call.1} parent=1 // pred_region
      _
    $region13: #{tpu_custom_call.1} parent=1 // pred_fallthru
      _
    // Predicated region
    $region14: #{tpu_custom_call.1} parent=1 // pred_check
      _
    $region15: #{tpu_custom_call.1} parent=1 // pred_check_branch
      %27 = sbr.rel (0) target = $region17
    $region16: #{tpu_custom_call.1} parent=1 // pred_region
      _
    $region17: #{tpu_custom_call.1} parent=1 // pred_fallthru
      _
    // Predicated region
    $region18: #{tpu_custom_call.1} parent=1 // pred_check
      _
    $region19: #{tpu_custom_call.1} parent=1 // pred_check_branch
      %29 = sbr.rel (0) target = $region21
    $region20: #{tpu_custom_call.1} parent=1 // pred_region
      _
    $region21: #{tpu_custom_call.1} parent=1 // pred_fallthru
      _
    // Predicated region
    $region22: #{tpu_custom_call.1} parent=1 // pred_check
      _
    $region23: #{tpu_custom_call.1} parent=1 // pred_check_branch
      %31 = sbr.rel (0) target = $region25
    $region24: #{tpu_custom_call.1} parent=1 // pred_region
      %32 = dma.done [#allocation4], 16
    $region25: #{tpu_custom_call.1} parent=1 // pred_fallthru
      _
    %33 = sfence
    %v34 = vld [vmem:[%s1] sm:$0xff]
    %v35 = vld [vmem:[%s1 + $0x8] sm:$0xff]
    %v36 = vld [vmem:[%s1 + $0x10] sm:$0xff]
    %v37 = vld [vmem:[%s1 + $0x18] sm:$0xff]
    %v38 = vld [vmem:[%s1 + $0x20] sm:$0xff]
    %v39 = vld [vmem:[%s1 + $0x28] sm:$0xff]
    %v40 = vld [vmem:[%s1 + $0x30] sm:$0xff]
    %v41 = vld [vmem:[%s1 + $0x38] sm:$0xff]
    %v42 = vld [vmem:[%s1 + $0x40] sm:$0xff]
    %v43 = vld [vmem:[%s1 + $0x48] sm:$0xff]
    %v44 = vld [vmem:[%s1 + $0x50] sm:$0xff]
    %v45 = vld [vmem:[%s1 + $0x58] sm:$0xff]
    %v46 = vld [vmem:[%s1 + $0x60] sm:$0xff]
    %v47 = vld [vmem:[%s1 + $0x68] sm:$0xff]
    %v48 = vld [vmem:[%s1 + $0x70] sm:$0xff]
    %v49 = vld [vmem:[%s1 + $0x78] sm:$0xff]
    %v50 = vld [vmem:[%s2] sm:$0xff]
    %v51 = vld [vmem:[%s2 + $0x8] sm:$0xff]
    %v52 = vld [vmem:[%s2 + $0x10] sm:$0xff]
    %v53 = vld [vmem:[%s2 + $0x18] sm:$0xff]
    %vm54 = vcmask 261120
    %v56 = vsel %vm54, %v34, 0
    %v59 = vsel %vm54, %v35, 0
    %v62 = vsel %vm54, %v36, 0
    %v65 = vsel %vm54, %v37, 0
    %v68 = vsel %vm54, %v38, 0
    %v71 = vsel %vm54, %v39, 0
    %v74 = vsel %vm54, %v40, 0
    %v77 = vsel %vm54, %v41, 0
    %v80 = vsel %vm54, %v42, 0
    %v83 = vsel %vm54, %v43, 0
    %v86 = vsel %vm54, %v44, 0
    %v89 = vsel %vm54, %v45, 0
    %v92 = vsel %vm54, %v46, 0
    %v95 = vsel %vm54, %v47, 0
    %v98 = vsel %vm54, %v48, 0
    %v101 = vsel %vm54, %v49, 0
    %103 = vmatprep.subr.mxu0 0.0
    %104 = vmatpush1.msra.mxu0 %v50
    %105 = vmatprep.subr.mxu0 0.0
    %106 = vmatpush1.msra.mxu0 %v51
    %107 = vmatprep.subr.mxu0 0.0
    %108 = vmatpush1.msra.mxu0 %v52
    %109 = vmatprep.subr.mxu0 0.0
    %110 = vmatpush1.msra.mxu0 %v53
    %111 = vmatprep.subr.mxu0 0.0
    %112 = vmatpush1.msra.mxu0 0.0
    %113 = vmatprep.subr.mxu0 0.0
    %114 = vmatpush1.msra.mxu0 0.0
    %115 = vmatprep.subr.mxu0 0.0
    %116 = vmatpush1.msra.mxu0 0.0
    %117 = vmatprep.subr.mxu0 0.0
    %118 = vmatpush1.msra.mxu0 0.0
    %119 = vmatprep.subr.mxu0 0.0
    %120 = vmatpush1.msra.mxu0 0.0
    %121 = vmatprep.subr.mxu0 0.0
    %122 = vmatpush1.msra.mxu0 0.0
    %123 = vmatprep.subr.mxu0 0.0
    %124 = vmatpush1.msra.mxu0 0.0
    %125 = vmatprep.subr.mxu0 0.0
    %126 = vmatpush1.msra.mxu0 0.0
    %127 = vmatprep.subr.mxu0 0.0
    %128 = vmatpush1.msra.mxu0 0.0
    %129 = vmatprep.subr.mxu0 0.0
    %130 = vmatpush1.msra.mxu0 0.0
    %131 = vmatprep.subr.mxu0 0.0
    %132 = vmatpush1.msra.mxu0 0.0
    %133 = vmatprep.subr.mxu0 0.0
    %134 = vmatpush1.msra.mxu0 0.0
    %135 = vmatprep.subr.mxu0 0.0
    %136 = vmatpush1.msra.mxu0 0.0
    %137 = vmatprep.subr.mxu0 0.0
    %138 = vmatpush1.msra.mxu0 0.0
    %139 = vmatprep.subr.mxu0 0.0
    %140 = vmatpush1.msra.mxu0 0.0
    %141 = vmatprep.subr.mxu0 0.0
    %142 = vmatpush1.msra.mxu0 0.0
    %143 = vmatprep.subr.mxu0 0.0
    %144 = vmatpush1.msra.mxu0 0.0
    %145 = vmatprep.subr.mxu0 0.0
    %146 = vmatpush1.msra.mxu0 0.0
    %147 = vmatprep.subr.mxu0 0.0
    %148 = vmatpush1.msra.mxu0 0.0
    %149 = vmatprep.subr.mxu0 0.0
    %150 = vmatpush1.msra.mxu0 0.0
    %151 = vmatprep.subr.mxu0 0.0
    %152 = vmatpush1.msra.mxu0 0.0
    %153 = vmatprep.subr.mxu0 0.0
    %154 = vmatpush1.msra.mxu0 0.0
    %155 = vmatprep.subr.mxu0 0.0
    %156 = vmatpush1.msra.mxu0 0.0
    %157 = vmatprep.subr.mxu0 0.0
    %158 = vmatpush1.msra.mxu0 0.0
    %159 = vmatprep.subr.mxu0 0.0
    %160 = vmatpush1.msra.mxu0 0.0
    %161 = vmatprep.subr.mxu0 0.0
    %162 = vmatpush1.msra.mxu0 0.0
    %163 = vmatprep.subr.mxu0 0.0
    %164 = vmatpush1.msra.mxu0 0.0
    %165 = vmatprep.subr.mxu0 0.0
    %166 = vmatpush1.msra.mxu0 0.0
    %167 = vmatprep.mubr.f32.mxu0 0.0
    %168 = vmatmul.mubr.f32.gmra.mrb[0].mxu0 %v56
    %v169 = vpop.f32.mrb[0].mxu0
    %v170 = vadd.f32 0.0, %v169
    %v171 = vpop.f32.mrb[0].mxu0
    %172 = vmatprep.mubr.f32.mxu0 0.0
    %173 = vmatmul.mubr.f32.gmra.mrb[0].mxu0 %v59
    %v174 = vpop.f32.mrb[0].mxu0
    %v175 = vadd.f32 0.0, %v174
    %v176 = vpop.f32.mrb[0].mxu0
    %177 = vmatprep.mubr.f32.mxu0 0.0
    %178 = vmatmul.mubr.f32.gmra.mrb[0].mxu0 %v62
    %v179 = vpop.f32.mrb[0].mxu0
    %v180 = vadd.f32 0.0, %v179
    %v181 = vpop.f32.mrb[0].mxu0
    %182 = vmatprep.mubr.f32.mxu0 0.0
    %183 = vmatmul.mubr.f32.gmra.mrb[0].mxu0 %v65
    %v184 = vpop.f32.mrb[0].mxu0
    %v185 = vadd.f32 0.0, %v184
    %v186 = vpop.f32.mrb[0].mxu0
    %187 = vmatprep.mubr.f32.mxu0 0.0
    %188 = vmatmul.mubr.f32.gmra.mrb[0].mxu0 %v68
    %v189 = vpop.f32.mrb[0].mxu0
    %v190 = vadd.f32 0.0, %v189
    %v191 = vpop.f32.mrb[0].mxu0
    %192 = vmatprep.mubr.f32.mxu0 0.0
    %193 = vmatmul.mubr.f32.gmra.mrb[0].mxu0 %v71
    %v194 = vpop.f32.mrb[0].mxu0
    %v195 = vadd.f32 0.0, %v194
    %v196 = vpop.f32.mrb[0].mxu0
    %197 = vmatprep.mubr.f32.mxu0 0.0
    %198 = vmatmul.mubr.f32.gmra.mrb[0].mxu0 %v74
    %v199 = vpop.f32.mrb[0].mxu0
    %v200 = vadd.f32 0.0, %v199
    %v201 = vpop.f32.mrb[0].mxu0
    %202 = vmatprep.mubr.f32.mxu0 0.0
    %203 = vmatmul.mubr.f32.gmra.mrb[0].mxu0 %v77
    %v204 = vpop.f32.mrb[0].mxu0
    %v205 = vadd.f32 0.0, %v204
    %v206 = vpop.f32.mrb[0].mxu0
    %207 = vmatprep.mubr.f32.mxu0 0.0
    %208 = vmatmul.mubr.f32.gmra.mrb[0].mxu0 %v80
    %v209 = vpop.f32.mrb[0].mxu0
    %v210 = vadd.f32 0.0, %v209
    %v211 = vpop.f32.mrb[0].mxu0
    %212 = vmatprep.mubr.f32.mxu0 0.0
    %213 = vmatmul.mubr.f32.gmra.mrb[0].mxu0 %v83
    %v214 = vpop.f32.mrb[0].mxu0
    %v215 = vadd.f32 0.0, %v214
    %v216 = vpop.f32.mrb[0].mxu0
    %217 = vmatprep.mubr.f32.mxu0 0.0
    %218 = vmatmul.mubr.f32.gmra.mrb[0].mxu0 %v86
    %v219 = vpop.f32.mrb[0].mxu0
    %v220 = vadd.f32 0.0, %v219
    %v221 = vpop.f32.mrb[0].mxu0
    %222 = vmatprep.mubr.f32.mxu0 0.0
    %223 = vmatmul.mubr.f32.gmra.mrb[0].mxu0 %v89
    %v224 = vpop.f32.mrb[0].mxu0
    %v225 = vadd.f32 0.0, %v224
    %v226 = vpop.f32.mrb[0].mxu0
    %227 = vmatprep.mubr.f32.mxu0 0.0
    %228 = vmatmul.mubr.f32.gmra.mrb[0].mxu0 %v92
    %v229 = vpop.f32.mrb[0].mxu0
    %v230 = vadd.f32 0.0, %v229
    %v231 = vpop.f32.mrb[0].mxu0
    %232 = vmatprep.mubr.f32.mxu0 0.0
    %233 = vmatmul.mubr.f32.gmra.mrb[0].mxu0 %v95
    %v234 = vpop.f32.mrb[0].mxu0
    %v235 = vadd.f32 0.0, %v234
    %v236 = vpop.f32.mrb[0].mxu0
    %237 = vmatprep.mubr.f32.mxu0 0.0
    %238 = vmatmul.mubr.f32.gmra.mrb[0].mxu0 %v98
    %v239 = vpop.f32.mrb[0].mxu0
    %v240 = vadd.f32 0.0, %v239
    %v241 = vpop.f32.mrb[0].mxu0
    %242 = vmatprep.mubr.f32.mxu0 0.0
    %243 = vmatmul.mubr.f32.gmra.mrb[0].mxu0 %v101
    %v244 = vpop.f32.mrb[0].mxu0
    %v245 = vadd.f32 0.0, %v244
    %v246 = vpop.f32.mrb[0].mxu0
    %247 = vdwg.mxu0
    %v248 = vld [vmem:[%s3] sm:$0xff]
    %v249 = vld [vmem:[%s3 + $0x8] sm:$0xff]
    %v250 = vld [vmem:[%s3 + $0x10] sm:$0xff]
    %v251 = vld [vmem:[%s3 + $0x18] sm:$0xff]
    %v252 = vld [vmem:[%s3 + $0x20] sm:$0xff]
    %v253 = vld [vmem:[%s3 + $0x28] sm:$0xff]
    %v254 = vld [vmem:[%s3 + $0x30] sm:$0xff]
    %v255 = vld [vmem:[%s3 + $0x38] sm:$0xff]
    %v256 = vld [vmem:[%s3 + $0x40] sm:$0xff]
    %v257 = vld [vmem:[%s3 + $0x48] sm:$0xff]
    %v258 = vld [vmem:[%s3 + $0x50] sm:$0xff]
    %v259 = vld [vmem:[%s3 + $0x58] sm:$0xff]
    %v260 = vld [vmem:[%s3 + $0x60] sm:$0xff]
    %v261 = vld [vmem:[%s3 + $0x68] sm:$0xff]
    %v262 = vld [vmem:[%s3 + $0x70] sm:$0xff]
    %v263 = vld [vmem:[%s3 + $0x78] sm:$0xff]
    %v264 = vld [vmem:[%s4] sm:$0x1]
    %266 = vset.pattern.permute.xlu0 0
    %267 = vperm.xlu0 %266, %v248
    %v268 = vpop.permute.xlu0 %267
    %271 = vset.pattern.permute.xlu0 0
    %272 = vperm.xlu0 %271, %v249
    %v273 = vpop.permute.xlu0 %272
    %276 = vset.pattern.permute.xlu0 0
    %277 = vperm.xlu0 %276, %v250
    %v278 = vpop.permute.xlu0 %277
    %281 = vset.pattern.permute.xlu0 0
    %282 = vperm.xlu0 %281, %v251
    %v283 = vpop.permute.xlu0 %282
    %286 = vset.pattern.permute.xlu0 0
    %287 = vperm.xlu0 %286, %v252
    %v288 = vpop.permute.xlu0 %287
    %291 = vset.pattern.permute.xlu0 0
    %292 = vperm.xlu0 %291, %v253
    %v293 = vpop.permute.xlu0 %292
    %296 = vset.pattern.permute.xlu0 0
    %297 = vperm.xlu0 %296, %v254
    %v298 = vpop.permute.xlu0 %297
    %301 = vset.pattern.permute.xlu0 0
    %302 = vperm.xlu0 %301, %v255
    %v303 = vpop.permute.xlu0 %302
    %306 = vset.pattern.permute.xlu0 0
    %307 = vperm.xlu0 %306, %v256
    %v308 = vpop.permute.xlu0 %307
    %311 = vset.pattern.permute.xlu0 0
    %312 = vperm.xlu0 %311, %v257
    %v313 = vpop.permute.xlu0 %312
    %316 = vset.pattern.permute.xlu0 0
    %317 = vperm.xlu0 %316, %v258
    %v318 = vpop.permute.xlu0 %317
    %321 = vset.pattern.permute.xlu0 0
    %322 = vperm.xlu0 %321, %v259
    %v323 = vpop.permute.xlu0 %322
    %326 = vset.pattern.permute.xlu0 0
    %327 = vperm.xlu0 %326, %v260
    %v328 = vpop.permute.xlu0 %327
    %331 = vset.pattern.permute.xlu0 0
    %332 = vperm.xlu0 %331, %v261
    %v333 = vpop.permute.xlu0 %332
    %336 = vset.pattern.permute.xlu0 0
    %337 = vperm.xlu0 %336, %v262
    %v338 = vpop.permute.xlu0 %337
    %341 = vset.pattern.permute.xlu0 0
    %342 = vperm.xlu0 %341, %v263
    %v343 = vpop.permute.xlu0 %342
    %v346 = vlaneseq
    %v347 = vshrl.u32 %v346, 7
    %v348 = vsub.s32 0, %v347
    %v349 = vrot.slane %v264, %v348
    %v351 = vadd.f32 %v268, %v349
    %v352 = vadd.f32 %v273, %v349
    %v353 = vadd.f32 %v278, %v349
    %v354 = vadd.f32 %v283, %v349
    %v355 = vadd.f32 %v288, %v349
    %v356 = vadd.f32 %v293, %v349
    %v357 = vadd.f32 %v298, %v349
    %v358 = vadd.f32 %v303, %v349
    %v359 = vadd.f32 %v308, %v349
    %v360 = vadd.f32 %v313, %v349
    %v361 = vadd.f32 %v318, %v349
    %v362 = vadd.f32 %v323, %v349
    %v363 = vadd.f32 %v328, %v349
    %v364 = vadd.f32 %v333, %v349
    %v365 = vadd.f32 %v338, %v349
    %v366 = vadd.f32 %v343, %v349
    %v367 = vadd.f32 %v351, %v170
    %v368 = vadd.f32 %v352, %v175
    %v369 = vadd.f32 %v353, %v180
    %v370 = vadd.f32 %v354, %v185
    %v371 = vadd.f32 %v355, %v190
    %v372 = vadd.f32 %v356, %v195
    %v373 = vadd.f32 %v357, %v200
    %v374 = vadd.f32 %v358, %v205
    %v375 = vadd.f32 %v359, %v210
    %v376 = vadd.f32 %v360, %v215
    %v377 = vadd.f32 %v361, %v220
    %v378 = vadd.f32 %v362, %v225
    %v379 = vadd.f32 %v363, %v230
    %v380 = vadd.f32 %v364, %v235
    %v381 = vadd.f32 %v365, %v240
    %v382 = vadd.f32 %v366, %v245
    %v383 = vmin.f32 %v367, 0.0
    %v384 = vmin.f32 %v368, 0.0
    %v385 = vmin.f32 %v369, 0.0
    %v386 = vmin.f32 %v370, 0.0
    %v387 = vmin.f32 %v371, 0.0
    %v388 = vmin.f32 %v372, 0.0
    %v389 = vmin.f32 %v373, 0.0
    %v390 = vmin.f32 %v374, 0.0
    %v391 = vmin.f32 %v375, 0.0
    %v392 = vmin.f32 %v376, 0.0
    %v393 = vmin.f32 %v377, 0.0
    %v394 = vmin.f32 %v378, 0.0
    %v395 = vmin.f32 %v379, 0.0
    %v396 = vmin.f32 %v380, 0.0
    %v397 = vmin.f32 %v381, 0.0
    %v398 = vmin.f32 %v382, 0.0
    %v399 = vmul.f32 %v383, 1.442695
    %v400 = vpow.pop %v399
    %v401 = vmul.f32 %v384, 1.442695
    %v402 = vpow.pop %v401
    %v403 = vmul.f32 %v385, 1.442695
    %v404 = vpow.pop %v403
    %v405 = vmul.f32 %v386, 1.442695
    %v406 = vpow.pop %v405
    %v407 = vmul.f32 %v387, 1.442695
    %v408 = vpow.pop %v407
    %v409 = vmul.f32 %v388, 1.442695
    %v410 = vpow.pop %v409
    %v411 = vmul.f32 %v389, 1.442695
    %v412 = vpow.pop %v411
    %v413 = vmul.f32 %v390, 1.442695
    %v414 = vpow.pop %v413
    %v415 = vmul.f32 %v391, 1.442695
    %v416 = vpow.pop %v415
    %v417 = vmul.f32 %v392, 1.442695
    %v418 = vpow.pop %v417
    %v419 = vmul.f32 %v393, 1.442695
    %v420 = vpow.pop %v419
    %v421 = vmul.f32 %v394, 1.442695
    %v422 = vpow.pop %v421
    %v423 = vmul.f32 %v395, 1.442695
    %v424 = vpow.pop %v423
    %v425 = vmul.f32 %v396, 1.442695
    %v426 = vpow.pop %v425
    %v427 = vmul.f32 %v397, 1.442695
    %v428 = vpow.pop %v427
    %v429 = vmul.f32 %v398, 1.442695
    %v430 = vpow.pop %v429
    %v431 = vmul.f32 %v400, %v400
    %v432 = vmul.f32 %v402, %v402
    %v433 = vmul.f32 %v404, %v404
    %v434 = vmul.f32 %v406, %v406
    %v435 = vmul.f32 %v408, %v408
    %v436 = vmul.f32 %v410, %v410
    %v437 = vmul.f32 %v412, %v412
    %v438 = vmul.f32 %v414, %v414
    %v439 = vmul.f32 %v416, %v416
    %v440 = vmul.f32 %v418, %v418
    %v441 = vmul.f32 %v420, %v420
    %v442 = vmul.f32 %v422, %v422
    %v443 = vmul.f32 %v424, %v424
    %v444 = vmul.f32 %v426, %v426
    %v445 = vmul.f32 %v428, %v428
    %v446 = vmul.f32 %v430, %v430
    %v447 = vadd.f32 %v400, %v431
    %v448 = vadd.f32 %v402, %v432
    %v449 = vadd.f32 %v404, %v433
    %v450 = vadd.f32 %v406, %v434
    %v451 = vadd.f32 %v408, %v435
    %v452 = vadd.f32 %v410, %v436
    %v453 = vadd.f32 %v412, %v437
    %v454 = vadd.f32 %v414, %v438
    %v455 = vadd.f32 %v416, %v439
    %v456 = vadd.f32 %v418, %v440
    %v457 = vadd.f32 %v420, %v441
    %v458 = vadd.f32 %v422, %v442
    %v459 = vadd.f32 %v424, %v443
    %v460 = vadd.f32 %v426, %v444
    %v461 = vadd.f32 %v428, %v445
    %v462 = vadd.f32 %v430, %v446
    %v463 = vmul.f32 %v431, %v431
    %v464 = vmul.f32 %v432, %v432
    %v465 = vmul.f32 %v433, %v433
    %v466 = vmul.f32 %v434, %v434
    %v467 = vmul.f32 %v435, %v435
    %v468 = vmul.f32 %v436, %v436
    %v469 = vmul.f32 %v437, %v437
    %v470 = vmul.f32 %v438, %v438
    %v471 = vmul.f32 %v439, %v439
    %v472 = vmul.f32 %v440, %v440
    %v473 = vmul.f32 %v441, %v441
    %v474 = vmul.f32 %v442, %v442
    %v475 = vmul.f32 %v443, %v443
    %v476 = vmul.f32 %v444, %v444
    %v477 = vmul.f32 %v445, %v445
    %v478 = vmul.f32 %v446, %v446
    %v479 = vadd.f32 %v447, %v463
    %v480 = vadd.f32 %v448, %v464
    %v481 = vadd.f32 %v449, %v465
    %v482 = vadd.f32 %v450, %v466
    %v483 = vadd.f32 %v451, %v467
    %v484 = vadd.f32 %v452, %v468
    %v485 = vadd.f32 %v453, %v469
    %v486 = vadd.f32 %v454, %v470
    %v487 = vadd.f32 %v455, %v471
    %v488 = vadd.f32 %v456, %v472
    %v489 = vadd.f32 %v457, %v473
    %v490 = vadd.f32 %v458, %v474
    %v491 = vadd.f32 %v459, %v475
    %v492 = vadd.f32 %v460, %v476
    %v493 = vadd.f32 %v461, %v477
    %v494 = vadd.f32 %v462, %v478
    %v495 = vmul.f32 %v463, %v463
    %v496 = vmul.f32 %v464, %v464
    %v497 = vmul.f32 %v465, %v465
    %v498 = vmul.f32 %v466, %v466
    %v499 = vmul.f32 %v467, %v467
    %v500 = vmul.f32 %v468, %v468
    %v501 = vmul.f32 %v469, %v469
    %v502 = vmul.f32 %v470, %v470
    %v503 = vmul.f32 %v471, %v471
    %v504 = vmul.f32 %v472, %v472
    %v505 = vmul.f32 %v473, %v473
    %v506 = vmul.f32 %v474, %v474
    %v507 = vmul.f32 %v475, %v475
    %v508 = vmul.f32 %v476, %v476
    %v509 = vmul.f32 %v477, %v477
    %v510 = vmul.f32 %v478, %v478
    %v511 = vadd.f32 %v479, %v495
    %v512 = vadd.f32 %v480, %v496
    %v513 = vadd.f32 %v481, %v497
    %v514 = vadd.f32 %v482, %v498
    %v515 = vadd.f32 %v483, %v499
    %v516 = vadd.f32 %v484, %v500
    %v517 = vadd.f32 %v485, %v501
    %v518 = vadd.f32 %v486, %v502
    %v519 = vadd.f32 %v487, %v503
    %v520 = vadd.f32 %v488, %v504
    %v521 = vadd.f32 %v489, %v505
    %v522 = vadd.f32 %v490, %v506
    %v523 = vadd.f32 %v491, %v507
    %v524 = vadd.f32 %v492, %v508
    %v525 = vadd.f32 %v493, %v509
    %v526 = vadd.f32 %v494, %v510
    %v527 = vmul.f32 %v495, %v495
    %v528 = vmul.f32 %v496, %v496
    %v529 = vmul.f32 %v497, %v497
    %v530 = vmul.f32 %v498, %v498
    %v531 = vmul.f32 %v499, %v499
    %v532 = vmul.f32 %v500, %v500
    %v533 = vmul.f32 %v501, %v501
    %v534 = vmul.f32 %v502, %v502
    %v535 = vmul.f32 %v503, %v503
    %v536 = vmul.f32 %v504, %v504
    %v537 = vmul.f32 %v505, %v505
    %v538 = vmul.f32 %v506, %v506
    %v539 = vmul.f32 %v507, %v507
    %v540 = vmul.f32 %v508, %v508
    %v541 = vmul.f32 %v509, %v509
    %v542 = vmul.f32 %v510, %v510
    %v543 = vadd.f32 %v511, %v527
    %v544 = vadd.f32 %v512, %v528
    %v545 = vadd.f32 %v513, %v529
    %v546 = vadd.f32 %v514, %v530
    %v547 = vadd.f32 %v515, %v531
    %v548 = vadd.f32 %v516, %v532
    %v549 = vadd.f32 %v517, %v533
    %v550 = vadd.f32 %v518, %v534
    %v551 = vadd.f32 %v519, %v535
    %v552 = vadd.f32 %v520, %v536
    %v553 = vadd.f32 %v521, %v537
    %v554 = vadd.f32 %v522, %v538
    %v555 = vadd.f32 %v523, %v539
    %v556 = vadd.f32 %v524, %v540
    %v557 = vadd.f32 %v525, %v541
    %v558 = vadd.f32 %v526, %v542
    %559 = vst [vmem:[#allocation5] sm:$0xff] %v543
    %560 = vst [vmem:[#allocation5 + $0x8] sm:$0xff] %v544
    %561 = vst [vmem:[#allocation5 + $0x10] sm:$0xff] %v545
    %562 = vst [vmem:[#allocation5 + $0x18] sm:$0xff] %v546
    %563 = vst [vmem:[#allocation5 + $0x20] sm:$0xff] %v547
    %564 = vst [vmem:[#allocation5 + $0x28] sm:$0xff] %v548
    %565 = vst [vmem:[#allocation5 + $0x30] sm:$0xff] %v549
    %566 = vst [vmem:[#allocation5 + $0x38] sm:$0xff] %v550
    %567 = vst [vmem:[#allocation5 + $0x40] sm:$0xff] %v551
    %568 = vst [vmem:[#allocation5 + $0x48] sm:$0xff] %v552
    %569 = vst [vmem:[#allocation5 + $0x50] sm:$0xff] %v553
    %570 = vst [vmem:[#allocation5 + $0x58] sm:$0xff] %v554
    %571 = vst [vmem:[#allocation5 + $0x60] sm:$0xff] %v555
    %572 = vst [vmem:[#allocation5 + $0x68] sm:$0xff] %v556
    %573 = vst [vmem:[#allocation5 + $0x70] sm:$0xff] %v557
    %574 = vst [vmem:[#allocation5 + $0x78] sm:$0xff] %v558
    // Predicated region
    $region26: #{tpu_custom_call.1} parent=1 // pred_check
      _
    $region27: #{tpu_custom_call.1} parent=1 // pred_check_branch
      %576 = sbr.rel (0) target = $region29
    $region28: #{tpu_custom_call.1} parent=1 // pred_region
      %s578 = ssub.s32 2048, 2048
      %579 = vsyncadd [#allocation3], %s578
      %s580 = sshll.u32 [#allocation5], 4
      %s581 = int_to_ptr.vmem [resolvable:$true] %s580
      %586 = dma.vmem_to_hbm [thread:$0]  %s581, 2048, %s5, [#allocation3], 128, 128, 8
    $region29: #{tpu_custom_call.1} parent=1 // pred_fallthru
      _
    // Predicated region
    $region30: #{tpu_custom_call.1} parent=1 // pred_check
      _
    $region31: #{tpu_custom_call.1} parent=1 // pred_check_branch
      %588 = sbr.rel (0) target = $region33
    $region32: #{tpu_custom_call.1} parent=1 // pred_region
      %589 = dma.done [#allocation3], 2048
    $region33: #{tpu_custom_call.1} parent=1 // pred_fallthru
      _
    %590 = vsyncpa [#allocation3], 1
    %591 = vsyncpa [#allocation4], 1

</llo_original>
